<compile_context>
chip_gen: v7x
topology: tpu7x:2x2x1
jax: 0.10.0
libtpu: 0.0.40
codegen_flags: <defaults>
</compile_context>

<pallas_src>
import functools

import jax
import jax.numpy as jnp
from jax.experimental import pallas as pl
from jax.experimental.pallas import tpu as pltpu

_LANES = 128                       # lane width (points per sublane row)
_MAX_SUBLANES = 2048               # sublane rows per grid step (<= ~3 MiB/input tile f32)
_VMEM_LIMIT_BYTES = 32 * 1024 * 1024


def _num_parallel_cores():
    """1 on single-TensorCore chips (v5e/v6e); 2 on multi-TC parts (v7x, v4/v5p)."""
    try:
        kind = jax.devices()[0].device_kind.lower()
    except Exception:
        return 1
    if any(t in kind for t in ("v5 lite", "v5e", "v6 lite", "v6e")):
        return 1
    return 2


def _tiling(n_points, num_cores):
    rows = -(-n_points // _LANES)                       # ceil(n / 128)
    rows_per_core = -(-rows // num_cores)
    s = min(_MAX_SUBLANES, ((rows_per_core + 7) // 8) * 8)   # multiple of 8 sublanes
    steps = -(-rows_per_core // s)
    rows_total = num_cores * steps * s
    return s, steps, rows_total


def pack_points(x2, rows_total):
    """(N, 3) -> component-major (3, rows_total, 128), zero-padded.

    This repack is a full extra HBM pass; when the point set is static across
    training steps (e.g. `coords`), call it once and reuse the packed array.
    """
    n = x2.shape[0]
    xt = jnp.pad(x2.T, ((0, 0), (0, rows_total * _LANES - n)))
    return xt.reshape(3, rows_total, _LANES)


def _radial_loss_kernel(b_ref, c_ref, out_ref, acc_ref, *, base_radius):
    """One grid step: accumulate the per-point radial loss over an (S, 128) tile."""
    i = pl.program_id(1)

    @pl.when(i == 0)
    def _():
        acc_ref[...] = jnp.zeros_like(acc_ref)

    # Full (S, 128) vreg-packed tiles of each vector component, promoted to f32.
    bx = b_ref[0].astype(jnp.float32)
    by = b_ref[1].astype(jnp.float32)
    bz = b_ref[2].astype(jnp.float32)
    cx = c_ref[0].astype(jnp.float32)
    cy = c_ref[1].astype(jnp.float32)
    cz = c_ref[2].astype(jnp.float32)

    b_sq = bx * bx + by * by + bz * bz
    c_sq = cx * cx + cy * cy + cz * cz
    dot = bx * cx + by * cy + bz * cz
    prod = b_sq * c_sq                       # ||b||^2 * ||coords||^2

    # Lagrange identity: ||b x c||^2 = ||b||^2 ||c||^2 - (b.c)^2.  Clamp >= 0 to
    # guard f32 cancellation when b is nearly parallel to coords (avoids NaN).
    cross_sq = jnp.maximum(prod - dot * dot, 0.0)

    # 1 / (||b||*||c|| + 1e-7)  ~=  rsqrt(prod + 1e-14): exact hardware rsqrt (EUP),
    # no Newton refinement needed.  Padded points: cross_sq == 0 -> contribution 0.
    inv_norm = jax.lax.rsqrt(prod + 1e-14)
    radial_reg = jnp.sqrt(cross_sq) * inv_norm

    radius_weight = jnp.maximum(jnp.sqrt(c_sq + 1e-7) - base_radius, 0.0)

    contrib = radial_reg * radius_weight     # (S, 128)

    # Fold (S, 128) -> (8, 128) with pure vreg adds (reshape is a vreg relabel),
    # then a single load/add/store on the resident (8, 128) accumulator.
    s = contrib.shape[0]
    acc_ref[...] += jnp.sum(contrib.reshape(s // 8, 8, contrib.shape[1]), axis=0)

    @pl.when(i == pl.num_programs(1) - 1)
    def _():
        # fold the 8 sublanes once at the end; keep the store lane-dense (128 wide)
        out_ref[...] = jnp.sum(acc_ref[...], axis=0, keepdims=True).reshape(
            1, 1, acc_ref.shape[1])


def radial_loss_packed(bt, ct, n_points, base_radius, *, s, steps, num_cores):
    """Fast path: inputs already packed component-major as (3, rows_total, 128)."""
    kernel = functools.partial(_radial_loss_kernel, base_radius=float(base_radius))

    partials = pl.pallas_call(
        kernel,
        out_shape=jax.ShapeDtypeStruct((num_cores, 1, _LANES), jnp.float32),
        grid=(num_cores, steps),
        in_specs=[
            pl.BlockSpec((3, s, _LANES), lambda p, i: (0, p * steps + i, 0)),
            pl.BlockSpec((3, s, _LANES), lambda p, i: (0, p * steps + i, 0)),
        ],
        out_specs=pl.BlockSpec((1, 1, _LANES), lambda p, i: (p, 0, 0)),
        scratch_shapes=[pltpu.VMEM((8, _LANES), jnp.float32)],
        compiler_params=pltpu.CompilerParams(
            dimension_semantics=("parallel", "arbitrary"),
            vmem_limit_bytes=_VMEM_LIMIT_BYTES),
    )(bt, ct)

    # tiny final reduction over (num_cores, 1, 128) partial sums in plain JAX
    return jnp.sum(partials) / jnp.float32(n_points)


def radial_loss(b, coords, base_radius, *, coords_packed=None):
    """b, coords: arrays of shape (..., 3). Returns scalar mean loss (float32).

    For training loops where `coords` is static, pre-pack it once with
    `pack_points` and pass it via `coords_packed` to skip the repack pass.
    """
    assert b.shape[-1] == 3
    b2 = b.reshape(-1, 3)
    n = b2.shape[0]

    num_cores = _num_parallel_cores()
    s, steps, rows_total = _tiling(n, num_cores)

    bt = pack_points(b2, rows_total)
    if coords_packed is not None:
        ct = coords_packed
    else:
        ct = pack_points(coords.reshape(-1, 3), rows_total)

    # TODO(synk): ideally the producer of `b` emits component-major output so the
    # `pack_points(b2, ...)` pass disappears entirely from the training step.
    return radial_loss_packed(bt, ct, n, base_radius,
                              s=s, steps=steps, num_cores=num_cores)


def radial_loss_ref(b, coords, base_radius):
    """Pure-JAX reference mirroring the PyTorch forward (for correctness check)."""
    cross = jnp.cross(b, coords, axis=-1)
    radial_reg = jnp.linalg.norm(cross, axis=-1)
    radius_w = jnp.sqrt(jnp.sum(coords ** 2, axis=-1) + 1e-7)
    radius_w = jnp.maximum(radius_w - base_radius, 0.0)
    normalization = jnp.linalg.norm(b, axis=-1) * jnp.linalg.norm(coords, axis=-1) + 1e-7
    return jnp.mean(radial_reg / normalization * radius_w)


if __name__ == "__main__":
    # Deterministic "parameter" init mirroring __init__:
    #   base_radius * solRad[Mm] / Mm_per_ds, with solRad = 695.7 Mm.
    base_radius_in = 1.0
    Mm_per_ds = 695.7
    base_radius = base_radius_in * 695.7 / Mm_per_ds  # -> 1.0 in ds units

    key = jax.random.PRNGKey(0)
    kb, kc = jax.random.split(key)
    # batch of 2 point clouds of 100 points each, 3-vectors (N=200, exercises padding)
    b = jax.random.normal(kb, (2, 100, 3), dtype=jnp.float32)
    coords = 2.0 * jax.random.normal(kc, (2, 100, 3), dtype=jnp.float32)

    # Demonstrate the intended fast path: pack the static coords once, reuse it.
    n = b.reshape(-1, 3).shape[0]
    num_cores = _num_parallel_cores()
    s, steps, rows_total = _tiling(n, num_cores)
    coords_packed = pack_points(coords.reshape(-1, 3), rows_total)

    out = radial_loss(b, coords, base_radius, coords_packed=coords_packed)
    out = jax.block_until_ready(out)

    ref = radial_loss_ref(b, coords, base_radius)
    assert jnp.allclose(out, ref, rtol=1e-4, atol=1e-7), (out, ref)

    print("KERNEL_OK")
</pallas_src>

<mosaic_0001>
module attributes {stable_mosaic.version = 11 : i64} {
  func.func @_radial_loss_kernel(%arg0: i32, %arg1: i32, %arg2: memref<3x8x128xf32, #tpu.memory_space<vmem>>, %arg3: memref<3x8x128xf32, #tpu.memory_space<vmem>>, %arg4: memref<1x1x128xf32, #tpu.memory_space<vmem>>, %arg5: memref<8x128xf32, #tpu.memory_space<vmem>>) attributes {dimension_semantics = [#tpu.dimension_semantics<parallel>, #tpu.dimension_semantics<arbitrary>], iteration_bounds = array<i64: 2, 1>, scalar_prefetch = 0 : i64, scratch_operands = 1 : i64, tpu.core_type = #tpu.core_type<tc>, window_params = [{transform_indices = @transform_0, window_bounds = array<i64: 3, 8, 128>}, {transform_indices = @transform_1, window_bounds = array<i64: 3, 8, 128>}, {transform_indices = @transform_2, window_bounds = array<i64: 1, 1, 128>}]} {
    %c0_i32 = arith.constant 0 : i32
    %0 = arith.cmpi eq, %arg1, %c0_i32 : i32
    %1 = arith.extui %0 : i1 to i32
    %c0_i32_0 = arith.constant 0 : i32
    %2 = arith.cmpi ne, %1, %c0_i32_0 : i32
    scf.if %2 {
      %cst_27 = arith.constant 0.000000e+00 : f32
      %56 = vector.broadcast %cst_27 : f32 to vector<8x128xf32>
      %c0_28 = arith.constant 0 : index
      %c0_29 = arith.constant 0 : index
      %57 = vector.load %arg5[%c0_28, %c0_29] : memref<8x128xf32, #tpu.memory_space<vmem>>, vector<8x128xf32>
      tpu.vector_store %arg5[%c0_28, %c0_29], %56 {strides = array<i32>} : memref<8x128xf32, #tpu.memory_space<vmem>>, vector<8x128xf32>,
    } else {
    }
    %c0 = arith.constant 0 : index
    %c0_1 = arith.constant 0 : index
    %c0_2 = arith.constant 0 : index
    %3 = vector.load %arg2[%c0, %c0_1, %c0_2] : memref<3x8x128xf32, #tpu.memory_space<vmem>>, vector<1x8x128xf32>
    %4 = vector.shape_cast %3 : vector<1x8x128xf32> to vector<8x128xf32>
    %c1 = arith.constant 1 : index
    %c0_3 = arith.constant 0 : index
    %c0_4 = arith.constant 0 : index
    %5 = vector.load %arg2[%c1, %c0_3, %c0_4] : memref<3x8x128xf32, #tpu.memory_space<vmem>>, vector<1x8x128xf32>
    %6 = vector.shape_cast %5 : vector<1x8x128xf32> to vector<8x128xf32>
    %c2 = arith.constant 2 : index
    %c0_5 = arith.constant 0 : index
    %c0_6 = arith.constant 0 : index
    %7 = vector.load %arg2[%c2, %c0_5, %c0_6] : memref<3x8x128xf32, #tpu.memory_space<vmem>>, vector<1x8x128xf32>
    %8 = vector.shape_cast %7 : vector<1x8x128xf32> to vector<8x128xf32>
    %c0_7 = arith.constant 0 : index
    %c0_8 = arith.constant 0 : index
    %c0_9 = arith.constant 0 : index
    %9 = vector.load %arg3[%c0_7, %c0_8, %c0_9] : memref<3x8x128xf32, #tpu.memory_space<vmem>>, vector<1x8x128xf32>
    %10 = vector.shape_cast %9 : vector<1x8x128xf32> to vector<8x128xf32>
    %c1_10 = arith.constant 1 : index
    %c0_11 = arith.constant 0 : index
    %c0_12 = arith.constant 0 : index
    %11 = vector.load %arg3[%c1_10, %c0_11, %c0_12] : memref<3x8x128xf32, #tpu.memory_space<vmem>>, vector<1x8x128xf32>
    %12 = vector.shape_cast %11 : vector<1x8x128xf32> to vector<8x128xf32>
    %c2_13 = arith.constant 2 : index
    %c0_14 = arith.constant 0 : index
    %c0_15 = arith.constant 0 : index
    %13 = vector.load %arg3[%c2_13, %c0_14, %c0_15] : memref<3x8x128xf32, #tpu.memory_space<vmem>>, vector<1x8x128xf32>
    %14 = vector.shape_cast %13 : vector<1x8x128xf32> to vector<8x128xf32>
    %15 = arith.mulf %4, %4 : vector<8x128xf32>
    %16 = arith.mulf %6, %6 : vector<8x128xf32>
    %17 = arith.addf %15, %16 : vector<8x128xf32>
    %18 = arith.mulf %8, %8 : vector<8x128xf32>
    %19 = arith.addf %17, %18 : vector<8x128xf32>
    %20 = arith.mulf %10, %10 : vector<8x128xf32>
    %21 = arith.mulf %12, %12 : vector<8x128xf32>
    %22 = arith.addf %20, %21 : vector<8x128xf32>
    %23 = arith.mulf %14, %14 : vector<8x128xf32>
    %24 = arith.addf %22, %23 : vector<8x128xf32>
    %25 = arith.mulf %4, %10 : vector<8x128xf32>
    %26 = arith.mulf %6, %12 : vector<8x128xf32>
    %27 = arith.addf %25, %26 : vector<8x128xf32>
    %28 = arith.mulf %8, %14 : vector<8x128xf32>
    %29 = arith.addf %27, %28 : vector<8x128xf32>
    %30 = arith.mulf %19, %24 : vector<8x128xf32>
    %31 = arith.mulf %29, %29 : vector<8x128xf32>
    %32 = arith.subf %30, %31 : vector<8x128xf32>
    %cst = arith.constant 0.000000e+00 : f32
    %33 = vector.broadcast %cst : f32 to vector<8x128xf32>
    %34 = arith.maximumf %32, %33 : vector<8x128xf32>
    %cst_16 = arith.constant 9.99999982E-15 : f32
    %35 = vector.broadcast %cst_16 : f32 to vector<8x128xf32>
    %36 = arith.addf %30, %35 : vector<8x128xf32>
    %37 = math.rsqrt %36 : vector<8x128xf32>
    %38 = math.sqrt %34 : vector<8x128xf32>
    %39 = arith.mulf %38, %37 : vector<8x128xf32>
    %cst_17 = arith.constant 1.000000e-07 : f32
    %40 = vector.broadcast %cst_17 : f32 to vector<8x128xf32>
    %41 = arith.addf %24, %40 : vector<8x128xf32>
    %42 = math.sqrt %41 : vector<8x128xf32>
    %cst_18 = arith.constant 1.000000e+00 : f32
    %43 = vector.broadcast %cst_18 : f32 to vector<8x128xf32>
    %44 = arith.subf %42, %43 : vector<8x128xf32>
    %cst_19 = arith.constant 0.000000e+00 : f32
    %45 = vector.broadcast %cst_19 : f32 to vector<8x128xf32>
    %46 = arith.maximumf %44, %45 : vector<8x128xf32>
    %47 = arith.mulf %39, %46 : vector<8x128xf32>
    %c0_20 = arith.constant 0 : index
    %c0_21 = arith.constant 0 : index
    %48 = vector.load %arg5[%c0_20, %c0_21] : memref<8x128xf32, #tpu.memory_space<vmem>>, vector<8x128xf32>
    %49 = vector.shape_cast %47 : vector<8x128xf32> to vector<1x8x128xf32>
    %cst_22 = arith.constant dense<0.000000e+00> : vector<8x128xf32>
    %50 = vector.multi_reduction <add>, %49, %cst_22 [0] : vector<1x8x128xf32> to vector<8x128xf32>
    %51 = arith.addf %48, %50 : vector<8x128xf32>
    %c0_23 = arith.constant 0 : index
    %c0_24 = arith.constant 0 : index
    %52 = vector.load %arg5[%c0_23, %c0_24] : memref<8x128xf32, #tpu.memory_space<vmem>>, vector<8x128xf32>
    tpu.vector_store %arg5[%c0_23, %c0_24], %51 {strides = array<i32>} : memref<8x128xf32, #tpu.memory_space<vmem>>, vector<8x128xf32>,
    %c0_i32_25 = arith.constant 0 : i32
    %53 = arith.cmpi eq, %arg1, %c0_i32_25 : i32
    %54 = arith.extui %53 : i1 to i32
    %c0_i32_26 = arith.constant 0 : i32
    %55 = arith.cmpi ne, %54, %c0_i32_26 : i32
    scf.if %55 {
      %c0_27 = arith.constant 0 : index
      %c0_28 = arith.constant 0 : index
      %56 = vector.load %arg5[%c0_27, %c0_28] : memref<8x128xf32, #tpu.memory_space<vmem>>, vector<8x128xf32>
      %cst_29 = arith.constant dense<0.000000e+00> : vector<128xf32>
      %57 = vector.multi_reduction <add>, %56, %cst_29 [0] : vector<8x128xf32> to vector<128xf32>
      %58 = vector.shape_cast %57 : vector<128xf32> to vector<1x128xf32>
      %59 = vector.shape_cast %58 : vector<1x128xf32> to vector<1x1x128xf32>
      %c0_30 = arith.constant 0 : index
      %c0_31 = arith.constant 0 : index
      %c0_32 = arith.constant 0 : index
      %60 = vector.load %arg4[%c0_30, %c0_31, %c0_32] : memref<1x1x128xf32, #tpu.memory_space<vmem>>, vector<1x1x128xf32>
      tpu.vector_store %arg4[%c0_30, %c0_31, %c0_32], %59 {strides = array<i32>} : memref<1x1x128xf32, #tpu.memory_space<vmem>>, vector<1x1x128xf32>,
    } else {
    }
    return
  }
  func.func @transform_0(%arg0: i32, %arg1: i32) -> (i32, i32, i32) {
    %c1_i32 = arith.constant 1 : i32
    %0 = arith.muli %arg0, %c1_i32 : i32
    %1 = arith.addi %0, %arg1 : i32
    %c0_i32 = arith.constant 0 : i32
    %c0_i32_0 = arith.constant 0 : i32
    %c0_i32_1 = arith.constant 0 : i32
    return %c0_i32, %1, %c0_i32_0 : i32, i32, i32
  }
  func.func @transform_1(%arg0: i32, %arg1: i32) -> (i32, i32, i32) {
    %c1_i32 = arith.constant 1 : i32
    %0 = arith.muli %arg0, %c1_i32 : i32
    %1 = arith.addi %0, %arg1 : i32
    %c0_i32 = arith.constant 0 : i32
    %c0_i32_0 = arith.constant 0 : i32
    %c0_i32_1 = arith.constant 0 : i32
    return %c0_i32, %1, %c0_i32_0 : i32, i32, i32
  }
  func.func @transform_2(%arg0: i32, %arg1: i32) -> (i32, i32, i32) {
    %c0_i32 = arith.constant 0 : i32
    %c0_i32_0 = arith.constant 0 : i32
    %c0_i32_1 = arith.constant 0 : i32
    return %arg0, %c0_i32, %c0_i32_0 : i32, i32, i32
  }
}

</mosaic_0001>

<llo_original>
// kernel: tpu_custom_call.1
$region0: #{tpu_custom_call.1}
  #allocation0 [shape = 'u32[]', space=smem, size = 0x4, offset = 0x4, fixed_abs, tag = 'smem constant byte address 0x4 - core index']
  #allocation1 [shape = 'u32[144,128]{1,0:T(1,128)}', space=vmem, size = 0x12000, scoped, tag = 'internal scratch']
  #allocation2 [shape = 'f32[8,128]{1,0:T(8,128)}', space=vmem, size = 0x1000, scoped, tag = 'scratch operand']
  %s0 = inlined_call_operand.hbm [shape: f32[3,16,128], index: 0, kind: input, shape index: {}]
  %s1 = inlined_call_operand.hbm [shape: f32[3,16,128], index: 1, kind: input, shape index: {}]
  %s2 = inlined_call_operand.hbm [shape: f32[2,1,128], index: 2, kind: output, shape index: {}]
  %s3 = sld [smem:[#allocation0]]
  $region57: #{tpu_custom_call.1} parent=0
    _
  %s5 = ssub.s32 1, %s3
  %s6 = scalar_select 0, %s5, %s3
  $region1: #{tpu_custom_call.1} parent=0
    #allocation3 [shape = 'u8[24576]{0}', space=vmem, size = 0x6000, scoped, tag = 'input window, operand 0']
    #allocation4 [shape = 's32[2]{0}', space=sflag, size = 0x8, scoped, tag = 'scoped memory for tpu_custom_call.1']
    #allocation5 [shape = 's32[2]{0}', space=sflag, size = 0x8, scoped, tag = 'scoped memory for tpu_custom_call.1']
    #allocation6 [shape = 'u8[24576]{0}', space=vmem, size = 0x6000, scoped, tag = 'input window, operand 1']
    #allocation7 [shape = 's32[2]{0}', space=sflag, size = 0x8, scoped, tag = 'scoped memory for tpu_custom_call.1']
    #allocation8 [shape = 'u8[1024]{0}', space=vmem, size = 0x400, scoped, tag = 'output window, operand 0']
    %7 = vsyncpa [#allocation4], 0
    %s8 = scalar_lea.sflag [#allocation4], 1
    %9 = vsyncpa %s8, 0
    %10 = vsyncpa [#allocation7], 0
    %s11 = scalar_lea.sflag [#allocation7], 1
    %12 = vsyncpa %s11, 0
    %13 = vsyncpa [#allocation5], 0
    %s14 = scalar_lea.sflag [#allocation5], 1
    %15 = vsyncpa %s14, 0
    loop: start=0, step=1, limit=4
    $region2: #{tpu_custom_call.1} parent=1 // loop_pre_header
      _
    $region3: #{tpu_custom_call.1} parent=1 // loop_header
      %s17 = sphi 0, %s21
      %p18 = scmp.ge.s32.totalorder %s17, 4
      %s24 = sphi 0, %s36
      %s25 = sphi 0, %s32
      %s26 = sphi 0, %s24
      %s27 = sphi 0, %s25
      %s28 = sphi 0, %s26
      %s29 = sphi 0, %s27
      %s41 = sphi 0, %s43
      %s44 = sphi 0, %s41
      %s45 = sphi 0, %s44
      %s61 = sphi 0, %s45
      %s69 = sphi 0, %s71
      %s72 = sphi 0, %s69
      %s73 = sphi 0, %s72
      %s89 = sphi 0, %s73
      %s95 = sphi 0, %s97
      %s98 = sphi 0, %s95
      %s99 = sphi 0, %s98
      %s115 = sphi 0, %s99
    $region4: #{tpu_custom_call.1} parent=1 // loop_header_branch
      %20 = sbr.rel (%p18) target = $region8
    $region5: #{tpu_custom_call.1} parent=1 // loop_body
      %s22 = ssub.s32 %s17, 1
      %s23 = ssub.s32 %s17, 2
      %s30 = sadd.s32 1, %s25
      %p31 = scmp.ge.s32.totalorder %s30, 1
      %s32 = scalar_select %p31, 0, %s30
      %s33 = sadd.s32 1, %s24
      %s34 = scalar_select %p31, %s33, %s24
      %p35 = scmp.ge.s32.totalorder %s34, 2
      %s36 = scalar_select %p35, 0, %s34
      %s37 = sadd.s32 %s24, %s25
      %s38 = sadd.s32 %s36, %s32
      %s39 = ssub.s32 %s37, %s38
      %p40 = scmp.eq.s32.totalorder %s39, 0
      %s42 = sadd.s32 %s41, 1
      %s43 = scalar_select %p40, %s41, %s42
      %p46 = pneg %p40
      %p47 = scmp.eq.s32.totalorder %s17, 1
      %p48 = por %p46, %p47
      %p49 = scmp.ne.s32.totalorder %s41, %s44
      %p50 = scmp.eq.s32.totalorder %s17, 0
      %p51 = por %p49, %p50
      %p52 = scmp.ne.s32.totalorder %s41, %s44
      %p53 = scmp.eq.s32.totalorder %s22, 1
      %p54 = por %p52, %p53
      %p55 = scmp.ne.s32.totalorder %s44, %s45
      %p56 = scmp.eq.s32.totalorder %s22, 0
      %p57 = por %p55, %p56
      %p58 = scmp.ne.s32.totalorder %s44, %s45
      %p59 = scmp.eq.s32.totalorder %s23, 1
      %p60 = por %p58, %p59
      %p62 = scmp.ne.s32.totalorder %s45, %s61
      %p63 = scmp.eq.s32.totalorder %s23, 0
      %p64 = por %p62, %p63
      %s65 = sadd.s32 %s24, %s25
      %s66 = sadd.s32 %s36, %s32
      %s67 = ssub.s32 %s65, %s66
      %p68 = scmp.eq.s32.totalorder %s67, 0
      %s70 = sadd.s32 %s69, 1
      %s71 = scalar_select %p68, %s69, %s70
      %p74 = pneg %p68
      %p75 = scmp.eq.s32.totalorder %s17, 1
      %p76 = por %p74, %p75
      %p77 = scmp.ne.s32.totalorder %s69, %s72
      %p78 = scmp.eq.s32.totalorder %s17, 0
      %p79 = por %p77, %p78
      %p80 = scmp.ne.s32.totalorder %s69, %s72
      %p81 = scmp.eq.s32.totalorder %s22, 1
      %p82 = por %p80, %p81
      %p83 = scmp.ne.s32.totalorder %s72, %s73
      %p84 = scmp.eq.s32.totalorder %s22, 0
      %p85 = por %p83, %p84
      %p86 = scmp.ne.s32.totalorder %s72, %s73
      %p87 = scmp.eq.s32.totalorder %s23, 1
      %p88 = por %p86, %p87
      %p90 = scmp.ne.s32.totalorder %s73, %s89
      %p91 = scmp.eq.s32.totalorder %s23, 0
      %p92 = por %p90, %p91
      %s93 = ssub.s32 %s24, %s36
      %p94 = scmp.eq.s32.totalorder %s93, 0
      %s96 = sadd.s32 %s95, 1
      %s97 = scalar_select %p94, %s95, %s96
      %p100 = pneg %p94
      %p101 = scmp.eq.s32.totalorder %s17, 1
      %p102 = por %p100, %p101
      %p103 = scmp.ne.s32.totalorder %s95, %s98
      %p104 = scmp.eq.s32.totalorder %s17, 0
      %p105 = por %p103, %p104
      %p106 = scmp.ne.s32.totalorder %s95, %s98
      %p107 = scmp.eq.s32.totalorder %s22, 1
      %p108 = por %p106, %p107
      %p109 = scmp.ne.s32.totalorder %s98, %s99
      %p110 = scmp.eq.s32.totalorder %s22, 0
      %p111 = por %p109, %p110
      %p112 = scmp.ne.s32.totalorder %s98, %s99
      %p113 = scmp.eq.s32.totalorder %s23, 1
      %p114 = por %p112, %p113
      %p116 = scmp.ne.s32.totalorder %s99, %s115
      %p117 = scmp.eq.s32.totalorder %s23, 0
      %p118 = por %p116, %p117
      %p119 = scmp.le.s32.totalorder 1, %s17
      %p120 = scmp.lt.s32.totalorder %s17, 3
      %p121 = pnand %p119, %p120
      %p122 = pneg %p121
      // Predicated region
      $region9: #{tpu_custom_call.1} parent=5 // pred_check
        _
      $region10: #{tpu_custom_call.1} parent=5 // pred_check_branch
        %124 = sbr.rel (%p121) target = $region12
      $region11: #{tpu_custom_call.1} parent=5 // pred_region
        %s125 = ssub.s32 %s17, 1
      $region12: #{tpu_custom_call.1} parent=5 // pred_fallthru
        _
      %p126 = scmp.lt.s32.totalorder %s17, 2
      // Predicated region
      $region13: #{tpu_custom_call.1} parent=5 // pred_check
        %p127 = pneg %p126
      $region14: #{tpu_custom_call.1} parent=5 // pred_check_branch
        %129 = sbr.rel (%p127) target = $region16
      $region15: #{tpu_custom_call.1} parent=5 // pred_region
        // Predicated region
        $region17: #{tpu_custom_call.1} parent=15 // pred_check
          %p130 = pneg %p51
        $region18: #{tpu_custom_call.1} parent=15 // pred_check_branch
          %132 = sbr.rel (%p130) target = $region20
        $region19: #{tpu_custom_call.1} parent=15 // pred_region
          %s133 = sand.u32 %s41, 1
          %s134 = scalar_lea.sflag [#allocation4], %s133
          %s135 = sand.u32 %s41, 1
          %s136 = smul.addr %s135, 24
          %s137 = scalar_lea.vmem [#allocation3], %s136
          %s138 = sadd.s32 %s24, %s25
          %s140 = ssub.s32 384, 384
          %141 = vsyncadd %s134, %s140
          %s142 = smul.addr %s138, 128
          %s143 = scalar_lea.hbm %s0, %s142
          %s144 = sshll.u32 %s137, 4
          %s145 = int_to_ptr.vmem [resolvable:$true] %s144
          %150 = dma.hbm_to_vmem [thread:$0]  %s143, 384, %s145, %s134, 256, 128, 8
        $region20: #{tpu_custom_call.1} parent=15 // pred_fallthru
          _
        // Predicated region
        $region21: #{tpu_custom_call.1} parent=15 // pred_check
          %p151 = pneg %p79
        $region22: #{tpu_custom_call.1} parent=15 // pred_check_branch
          %153 = sbr.rel (%p151) target = $region24
        $region23: #{tpu_custom_call.1} parent=15 // pred_region
          %s154 = sand.u32 %s69, 1
          %s155 = scalar_lea.sflag [#allocation7], %s154
          %s156 = sand.u32 %s69, 1
          %s157 = smul.addr %s156, 24
          %s158 = scalar_lea.vmem [#allocation6], %s157
          %s159 = sadd.s32 %s24, %s25
          %s161 = ssub.s32 384, 384
          %162 = vsyncadd %s155, %s161
          %s163 = smul.addr %s159, 128
          %s164 = scalar_lea.hbm %s1, %s163
          %s165 = sshll.u32 %s158, 4
          %s166 = int_to_ptr.vmem [resolvable:$true] %s165
          %171 = dma.hbm_to_vmem [thread:$0]  %s164, 384, %s166, %s155, 256, 128, 8
        $region24: #{tpu_custom_call.1} parent=15 // pred_fallthru
          _
      $region16: #{tpu_custom_call.1} parent=5 // pred_fallthru
        _
      %p172 = scmp.le.s32.totalorder 1, %s17
      %p173 = scmp.lt.s32.totalorder %s17, 3
      %p174 = pnand %p172, %p173
      %p175 = pneg %p174
      // Predicated region
      $region25: #{tpu_custom_call.1} parent=5 // pred_check
        _
      $region26: #{tpu_custom_call.1} parent=5 // pred_check_branch
        %177 = sbr.rel (%p174) target = $region28
      $region27: #{tpu_custom_call.1} parent=5 // pred_region
        %s178 = ssub.s32 %s17, 1
        %s179 = sand.u32 %s44, 1
        %s180 = scalar_lea.sflag [#allocation4], %s179
        %s181 = sand.u32 %s44, 1
        %s182 = smul.addr %s181, 24
        %s183 = scalar_lea.vmem [#allocation3], %s182
        // Predicated region
        $region29: #{tpu_custom_call.1} parent=27 // pred_check
          %p184 = pneg %p57
        $region30: #{tpu_custom_call.1} parent=27 // pred_check_branch
          %186 = sbr.rel (%p184) target = $region32
        $region31: #{tpu_custom_call.1} parent=27 // pred_region
          %187 = dma.done %s180, 384
        $region32: #{tpu_custom_call.1} parent=27 // pred_fallthru
          _
        %s188 = sand.u32 %s72, 1
        %s189 = scalar_lea.sflag [#allocation7], %s188
        %s190 = sand.u32 %s72, 1
        %s191 = smul.addr %s190, 24
        %s192 = scalar_lea.vmem [#allocation6], %s191
        // Predicated region
        $region33: #{tpu_custom_call.1} parent=27 // pred_check
          %p193 = pneg %p85
        $region34: #{tpu_custom_call.1} parent=27 // pred_check_branch
          %195 = sbr.rel (%p193) target = $region36
        $region35: #{tpu_custom_call.1} parent=27 // pred_region
          %196 = dma.done %s189, 384
        $region36: #{tpu_custom_call.1} parent=27 // pred_fallthru
          _
        %s197 = sand.u32 %s44, 1
        %s198 = scalar_lea.sflag [#allocation4], %s197
        %s199 = sand.u32 %s44, 1
        %s200 = smul.addr %s199, 24
        %s201 = scalar_lea.vmem [#allocation3], %s200
        %p202 = pneg %p57
        %p203 = pneg %p54
        %s204 = sand.u32 %s72, 1
        %s205 = scalar_lea.sflag [#allocation7], %s204
        %s206 = sand.u32 %s72, 1
        %s207 = smul.addr %s206, 24
        %s208 = scalar_lea.vmem [#allocation6], %s207
        %p209 = pneg %p85
        %p210 = pneg %p82
        %p211 = pneg %p111
        %p212 = pneg %p108
        %s213 = sand.u32 %s98, 1
        %s214 = scalar_lea.sflag [#allocation5], %s213
        %s215 = sand.u32 %s98, 1
        %s216 = scalar_lea.vmem [#allocation8], %s215
        %s217 = sadd.s32 %s26, %s27
        %s218 = sadd.s32 %s26, %s27
        %p219 = scmp.eq.s32.totalorder %s27, 0
        // Predicated region
        $region37: #{tpu_custom_call.1} parent=27 // pred_check
          %p220 = pneg %p219
        $region38: #{tpu_custom_call.1} parent=27 // pred_check_branch
          %222 = sbr.rel (%p220) target = $region40
        $region39: #{tpu_custom_call.1} parent=27 // pred_region
          %223 = vst [vmem:[#allocation2] sm:$0xff] 0.0
        $region40: #{tpu_custom_call.1} parent=27 // pred_fallthru
          _
        %v224 = vld [vmem:[%s183] sm:$0xff]
        %s225 = scalar_lea.vmem %s183, 8 [#allocation3]
        %v226 = vld [vmem:[%s225] sm:$0xff]
        %s227 = scalar_lea.vmem %s183, 16 [#allocation3]
        %v228 = vld [vmem:[%s227] sm:$0xff]
        %v229 = vld [vmem:[%s192] sm:$0xff]
        %s230 = scalar_lea.vmem %s192, 8 [#allocation6]
        %v231 = vld [vmem:[%s230] sm:$0xff]
        %s232 = scalar_lea.vmem %s192, 16 [#allocation6]
        %v233 = vld [vmem:[%s232] sm:$0xff]
        %v234 = vmul.f32 %v224, %v224
        %v235 = vmul.f32 %v226, %v226
        %v236 = vadd.f32 %v234, %v235
        %v237 = vmul.f32 %v228, %v228
        %v238 = vadd.f32 %v236, %v237
        %v239 = vmul.f32 %v229, %v229
        %v240 = vmul.f32 %v231, %v231
        %v241 = vadd.f32 %v239, %v240
        %v242 = vmul.f32 %v233, %v233
        %v243 = vadd.f32 %v241, %v242
        %v244 = vmul.f32 %v224, %v229
        %v245 = vmul.f32 %v226, %v231
        %v246 = vadd.f32 %v244, %v245
        %v247 = vmul.f32 %v228, %v233
        %v248 = vadd.f32 %v246, %v247
        %v249 = vmul.f32 %v238, %v243
        %v250 = vmul.f32 %v248, %v248
        %v251 = vsub.f32 %v249, %v250
        %v252 = vmax.f32 %v251, 0.0
        %v253 = vadd.f32 %v249, 1e-14
        %v254 = vrsqrt.pop %v253
        %v255 = vrsqrt.pop %v252
        %v256 = vmul.f32 %v252, %v255
        %vm257 = vcmp.eq.f32.partialorder %v252, inf
        %v258 = vsel %vm257, %v252, %v256
        %vm259 = vcmp.eq.f32.partialorder %v252, 0.0
        %v260 = vand.u32 %v252, 2147483648
        %v261 = vsel %vm259, %v260, %v258
        %v262 = vmul.f32 %v261, %v254
        %v263 = vadd.f32 %v243, 1e-07
        %v264 = vrsqrt.pop %v263
        %v265 = vmul.f32 %v263, %v264
        %vm266 = vcmp.eq.f32.partialorder %v263, inf
        %v267 = vsel %vm266, %v263, %v265
        %vm268 = vcmp.eq.f32.partialorder %v263, 0.0
        %v269 = vand.u32 %v263, 2147483648
        %v270 = vsel %vm268, %v269, %v267
        %v271 = vsub.f32 %v270, 1.0
        %v272 = vmax.f32 %v271, 0.0
        %v273 = vmul.f32 %v262, %v272
        %v274 = vld [vmem:[#allocation2] sm:$0xff]
        %v275 = vadd.f32 %v273, 0.0
        %v276 = vadd.f32 %v274, %v275
        %277 = vst [vmem:[#allocation2] sm:$0xff] %v276
        // Predicated region
        $region41: #{tpu_custom_call.1} parent=27 // pred_check
          %p278 = pneg %p219
        $region42: #{tpu_custom_call.1} parent=27 // pred_check_branch
          %280 = sbr.rel (%p278) target = $region44
        $region43: #{tpu_custom_call.1} parent=27 // pred_region
          %v281 = vld [vmem:[#allocation2] sm:$0xff]
          %v282 = vrot.slane %v281, 4
          %v283 = vadd.f32 %v281, %v282
          %v284 = vrot.slane %v283, 2
          %v285 = vadd.f32 %v283, %v284
          %v286 = vrot.slane %v285, 1
          %v287 = vadd.f32 %v285, %v286
          %288 = vst [vmem:[%s216] sm:$0x1] %v287
        $region44: #{tpu_custom_call.1} parent=27 // pred_fallthru
          _
        %s289 = sand.u32 %s98, 1
        %s290 = scalar_lea.sflag [#allocation5], %s289
        %s291 = sand.u32 %s98, 1
        %s292 = scalar_lea.vmem [#allocation8], %s291
        // Predicated region
        $region45: #{tpu_custom_call.1} parent=27 // pred_check
          %p293 = pneg %p108
        $region46: #{tpu_custom_call.1} parent=27 // pred_check_branch
          %295 = sbr.rel (%p293) target = $region48
        $region47: #{tpu_custom_call.1} parent=27 // pred_region
          %s297 = ssub.s32 16, 16
          %298 = vsyncadd %s290, %s297
          %s299 = smul.addr %s26, 16
          %s300 = scalar_lea.hbm %s2, %s299
          %s302 = sshll.u32 %s292, 4
          %s303 = int_to_ptr.vmem [resolvable:$true] %s302
          %305 = dma.vmem_to_hbm [thread:$0]  %s303, 16, %s300, %s290
        $region48: #{tpu_custom_call.1} parent=27 // pred_fallthru
          _
      $region28: #{tpu_custom_call.1} parent=5 // pred_fallthru
        _
      %p306 = scmp.le.s32.totalorder 2, %s17
      // Predicated region
      $region49: #{tpu_custom_call.1} parent=5 // pred_check
        %p307 = pneg %p306
      $region50: #{tpu_custom_call.1} parent=5 // pred_check_branch
        %309 = sbr.rel (%p307) target = $region52
      $region51: #{tpu_custom_call.1} parent=5 // pred_region
        %s310 = ssub.s32 %s17, 2
        // Predicated region
        $region53: #{tpu_custom_call.1} parent=51 // pred_check
          %p311 = pneg %p114
        $region54: #{tpu_custom_call.1} parent=51 // pred_check_branch
          %313 = sbr.rel (%p311) target = $region56
        $region55: #{tpu_custom_call.1} parent=51 // pred_region
          %s314 = sand.u32 %s99, 1
          %s315 = scalar_lea.sflag [#allocation5], %s314
          %s316 = sand.u32 %s99, 1
          %s317 = scalar_lea.vmem [#allocation8], %s316
          %318 = dma.done %s315, 16
        $region56: #{tpu_custom_call.1} parent=51 // pred_fallthru
          _
      $region52: #{tpu_custom_call.1} parent=5 // pred_fallthru
        _
    $region6: #{tpu_custom_call.1} parent=1 // loop_footer
      %s21 = sadd.s32 1, %s17
    $region7: #{tpu_custom_call.1} parent=1 // loop_footer_branch
      %16 = sbr.rel target = $region3
    $region8: #{tpu_custom_call.1} parent=1 // loop_exit
      _
    %319 = vsyncpa [#allocation4], 1
    %s320 = scalar_lea.sflag [#allocation4], 1
    %321 = vsyncpa %s320, 1
    %322 = vsyncpa [#allocation7], 1
    %s323 = scalar_lea.sflag [#allocation7], 1
    %324 = vsyncpa %s323, 1
    %325 = vsyncpa [#allocation5], 1
    %s326 = scalar_lea.sflag [#allocation5], 1
    %327 = vsyncpa %s326, 1

</llo_original>
